<compile_context>
chip_gen: v7x
topology: tpu7x:2x2x1
jax: 0.10.0
libtpu: 0.0.40
codegen_flags: <defaults>
</compile_context>

<pallas_src>
import functools

import numpy as np
import jax
import jax.numpy as jnp
from jax import lax
from jax.experimental import pallas as pl
from jax.experimental.pallas import tpu as pltpu


def _round_up(x, m):
    return ((x + m - 1) // m) * m


def copula_count_kernel(w_ref, f_ref, out_ref, acc_ref, *, dim, chunks_per_tile,
                        part_dtype):
    """Per-B-tile counts of columns n with all_d( F[d, n] < w[b, d] ).

    w_ref:   (TB, D)                    resident across split / N axes
    f_ref:   (chunks_per_tile, D, LC)   streamed along the N (reduction) axis
    out_ref: (1, TB, 1) f32             partial count for this (split, B-tile)
    acc_ref: (TB, 128) f32 VMEM         lane-dense running per-lane counts
    """
    nj = pl.program_id(2)
    lc = f_ref.shape[-1]

    @pl.when(nj == 0)
    def _init():
        acc_ref[...] = jnp.zeros_like(acc_ref)

    w = w_ref[...]                                          # (TB, D)

    def chunk_body(c, carry):
        fc = f_ref[c]                                       # (D, LC)
        # Running AND over the small D axis; never a (TB, D, LC) tensor.
        ind = fc[0:1, :] < w[:, 0:1]                        # (TB, LC) bool
        for d in range(1, dim):
            ind = jnp.logical_and(ind, fc[d:d + 1, :] < w[:, d:d + 1])
        # Lane-dense partial sums: plain VPU adds of 128-lane slices.  No
        # cross-lane (XLU) reduce and no masked narrow stores in the hot loop.
        partial = ind[:, 0:128].astype(part_dtype)
        for l in range(1, lc // 128):
            partial = partial + ind[:, l * 128:(l + 1) * 128].astype(part_dtype)
        acc_ref[...] += partial.astype(jnp.float32)
        return carry

    lax.fori_loop(0, chunks_per_tile, chunk_body, 0,
                  unroll=chunks_per_tile <= 8)

    @pl.when(nj == pl.num_programs(2) - 1)
    def _finalize():
        # Single cross-lane reduce + narrow store, once per (split, B-tile).
        out_ref[0, :, :] = jnp.sum(acc_ref[...], axis=1, keepdims=True)


def make_F(samples, est_F=None):
    """Constructor glue (plain JAX): rank-based empirical CDF."""
    n_samples = samples.shape[0]
    x = samples.T                                           # (D, N)
    order = jnp.argsort(x, axis=1)
    ranks = jnp.argsort(order, axis=1).astype(jnp.float32)  # 0..N-1 per row
    if est_F is None or est_F == "n+1":
        return (ranks + 1.0) / (n_samples + 1.0)
    c = float(est_F)
    assert 0.0 <= c <= 1.0
    return (ranks + c) / n_samples


def copula_estimator_forward(w, F, *, eps=1e-8, mode="add",
                             tb_max=256, tn_target=32768, lane_chunk=1024,
                             compare_dtype="auto"):
    """w: (B, D), F: (D, N) empirical CDF values -> out: (B,) float32."""
    B, D = w.shape
    D2, N = F.shape
    assert D == D2 and N >= 1

    # ---- compare representation --------------------------------------------
    # int16 fast path: exact integer-rank/threshold compare (assumes the default
    # est_F='n+1', i.e. F = (rank+1)/(N+1)).  Packed 16-bit compares ~double
    # VALU throughput on v6e/v7x; no win on v5e (no packed VALU), so keep f32.
    if compare_dtype == "auto":
        kind = jax.devices()[0].device_kind.lower()
        use_i16 = (N + 2 < 32767) and any(t in kind for t in ("v6", "v7", "7x"))
    else:
        use_i16 = compare_dtype == "int16"

    if use_i16:
        # (rank+1)/(N+1) < w  <=>  rank < ceil(w*(N+1)) - 1     (rank integer)
        ranks = jnp.round(F.astype(jnp.float32) * (N + 1.0) - 1.0)
        thr = jnp.ceil(w.astype(jnp.float32) * (N + 1.0)) - 1.0
        thr = jnp.clip(thr, -1.0, float(N))        # rank max = N-1, pad rank = N
        f_cmp = ranks.astype(jnp.int16)
        w_cmp = thr.astype(jnp.int16)
        pad_val = N                                 # never < any clipped threshold
    else:
        f_cmp = F.astype(jnp.float32)
        w_cmp = w.astype(jnp.float32)
        pad_val = float("inf")                      # never < any w

    # ---- B (parallel) tiling ------------------------------------------------
    if B >= 16:
        TB = min(tb_max, _round_up((B + 1) // 2, 16))   # >=2 tiles when possible
    else:
        TB = B
    B_pad = _round_up(B, TB)
    if B_pad != B:
        w_cmp = jnp.pad(w_cmp, ((0, B_pad - B), (0, 0)))    # 0-rows count nothing
    n_b_tiles = B_pad // TB

    # ---- N (reduction) tiling -----------------------------------------------
    # Big grid tiles (amortize per-step overhead); inside each step an inner
    # chunk loop of LC lanes bounds the live (TB, LC) temporaries.
    N_128 = _round_up(N, 128)
    LC = min(_round_up(lane_chunk, 128), N_128)
    # Split the reduction over a leading parallel axis when there is only one
    # B tile, so dual-TensorCore chips (v7x) keep both cores busy.  On
    # single-core chips this is the same total work.
    split = 2 if (n_b_tiles == 1 and N_128 >= 4 * LC) else 1
    g = _round_up(max(split, -(-N_128 // tn_target)), split)   # number of N tiles
    TN = _round_up(-(-N // g), LC)                 # per-tile width, multiple of LC
    N_pad = g * TN
    chunks_per_tile = TN // LC
    g_per_split = g // split

    if N_pad != N:
        f_cmp = jnp.pad(f_cmp, ((0, 0), (0, N_pad - N)), constant_values=pad_val)
    # Chunk-major layout (n_chunks, D, LC): the in-kernel chunk loop only does
    # dynamic indexing on the leading dim (no dynamic lane-dim slicing).
    f_chunks = f_cmp.reshape(D, N_pad // LC, LC).transpose(1, 0, 2)

    grid = (split, n_b_tiles, g_per_split)

    kernel = functools.partial(
        copula_count_kernel,
        dim=D,
        chunks_per_tile=chunks_per_tile,
        part_dtype=jnp.int16 if use_i16 else jnp.float32,
    )

    counts = pl.pallas_call(
        kernel,
        out_shape=jax.ShapeDtypeStruct((split, B_pad, 1), jnp.float32),
        grid=grid,
        in_specs=[
            # w: resident across split & N axes (no re-DMA)
            pl.BlockSpec((TB, D), lambda s, bi, nj: (bi, 0)),
            # F chunks: streamed / double-buffered along the reduction axis
            pl.BlockSpec((chunks_per_tile, D, LC),
                         lambda s, bi, nj: (s * g_per_split + nj, 0, 0)),
        ],
        out_specs=pl.BlockSpec((1, TB, 1), lambda s, bi, nj: (s, bi, 0)),
        scratch_shapes=[pltpu.VMEM((TB, 128), jnp.float32)],
        compiler_params=pltpu.CompilerParams(
            dimension_semantics=("parallel", "parallel", "arbitrary")),
    )(w_cmp, f_chunks)

    # Cheap epilogue in XLA: combine split partial counts, scale by 1/N, eps.
    out = jnp.sum(counts, axis=0)[:B, 0] * np.float32(1.0 / N)
    if mode == "add":
        out = out + np.float32(eps)
    elif mode == "max":
        out = jnp.maximum(out, np.float32(eps))
    return out


def copula_estimator_ref(w, F, eps=1e-8, mode="add"):
    """Pure-JAX reference mirroring the PyTorch forward."""
    ind = jnp.all(F[None, :, :] < w[:, :, None], axis=1)   # (B, N) bool
    out = jnp.mean(ind.astype(jnp.float32), axis=1)
    if mode == "add":
        out = out + eps
    elif mode == "max":
        out = jnp.maximum(out, eps)
    return out


if __name__ == "__main__":
    key = jax.random.PRNGKey(0)
    k_s, k_w = jax.random.split(key)

    n_samples, dim, batch = 16, 4, 2

    # Deterministic synthetic constructor input (samples) and query points w.
    samples = jax.random.normal(k_s, (n_samples, dim), dtype=jnp.float32)
    w = jax.random.uniform(k_w, (batch, dim), dtype=jnp.float32,
                           minval=0.1, maxval=0.9)

    F = make_F(samples)                                     # (dim, n_samples)
    out_ref = copula_estimator_ref(w, F, eps=1e-8, mode="add")

    # Portable float32 compare path (all TPU generations).
    out_f32 = copula_estimator_forward(w, F, eps=1e-8, mode="add",
                                       compare_dtype="float32")
    jax.block_until_ready(out_f32)
    np.testing.assert_allclose(np.asarray(out_f32), np.asarray(out_ref),
                               rtol=1e-6, atol=1e-6)

    # Auto path (packed int16 ranks/thresholds on v6e/v7x, float32 elsewhere).
    out_auto = copula_estimator_forward(w, F, eps=1e-8, mode="add",
                                        compare_dtype="auto")
    jax.block_until_ready(out_auto)
    np.testing.assert_allclose(np.asarray(out_auto), np.asarray(out_ref),
                               rtol=1e-6, atol=1e-6)

    print("KERNEL_OK")
</pallas_src>

<mosaic_0001>
module attributes {stable_mosaic.version = 11 : i64} {
  func.func @copula_count_kernel(%arg0: i32, %arg1: i32, %arg2: i32, %arg3: memref<2x4xf32, #tpu.memory_space<vmem>>, %arg4: memref<1x4x128xf32, #tpu.memory_space<vmem>>, %arg5: memref<1x2x1xf32, #tpu.memory_space<vmem>>, %arg6: memref<2x128xf32, #tpu.memory_space<vmem>>) attributes {dimension_semantics = [#tpu.dimension_semantics<parallel>, #tpu.dimension_semantics<parallel>, #tpu.dimension_semantics<arbitrary>], iteration_bounds = array<i64: 1, 1, 1>, scalar_prefetch = 0 : i64, scratch_operands = 1 : i64, tpu.core_type = #tpu.core_type<tc>, window_params = [{transform_indices = @transform_0, window_bounds = array<i64: 2, 4>}, {transform_indices = @transform_1, window_bounds = array<i64: 1, 4, 128>}, {transform_indices = @transform_2, window_bounds = array<i64: 1, 2, 1>}]} {
    %c0_i32 = arith.constant 0 : i32
    %0 = arith.cmpi eq, %arg2, %c0_i32 : i32
    %1 = arith.extui %0 : i1 to i32
    %c0_i32_0 = arith.constant 0 : i32
    %2 = arith.cmpi ne, %1, %c0_i32_0 : i32
    scf.if %2 {
      %cst = arith.constant 0.000000e+00 : f32
      %38 = vector.broadcast %cst : f32 to vector<2x128xf32>
      %c0_11 = arith.constant 0 : index
      %c0_12 = arith.constant 0 : index
      %39 = vector.load %arg6[%c0_11, %c0_12] : memref<2x128xf32, #tpu.memory_space<vmem>>, vector<2x128xf32>
      tpu.vector_store %arg6[%c0_11, %c0_12], %38 {strides = array<i32>} : memref<2x128xf32, #tpu.memory_space<vmem>>, vector<2x128xf32>,
    } else {
    }
    %c0 = arith.constant 0 : index
    %c0_1 = arith.constant 0 : index
    %3 = vector.load %arg3[%c0, %c0_1] : memref<2x4xf32, #tpu.memory_space<vmem>>, vector<2x4xf32>
    %c0_i32_2 = arith.constant 0 : i32
    %4 = arith.index_cast %c0_i32_2 : i32 to index
    %c0_3 = arith.constant 0 : index
    %c0_4 = arith.constant 0 : index
    %5 = vector.load %arg4[%4, %c0_3, %c0_4] : memref<1x4x128xf32, #tpu.memory_space<vmem>>, vector<1x4x128xf32>
    %6 = vector.shape_cast %5 : vector<1x4x128xf32> to vector<4x128xf32>
    %7 = vector.extract_strided_slice %6 {offsets = [0, 0], sizes = [1, 128], strides = [1, 1]} : vector<4x128xf32> to vector<1x128xf32>
    %8 = vector.extract_strided_slice %3 {offsets = [0, 0], sizes = [2, 1], strides = [1, 1]} : vector<2x4xf32> to vector<2x1xf32>
    %9 = vector.broadcast %7 : vector<1x128xf32> to vector<2x128xf32>
    %10 = vector.broadcast %8 : vector<2x1xf32> to vector<2x128xf32>
    %11 = arith.cmpf olt, %9, %10 : vector<2x128xf32>
    %12 = vector.extract_strided_slice %6 {offsets = [1, 0], sizes = [1, 128], strides = [1, 1]} : vector<4x128xf32> to vector<1x128xf32>
    %13 = vector.extract_strided_slice %3 {offsets = [0, 1], sizes = [2, 1], strides = [1, 1]} : vector<2x4xf32> to vector<2x1xf32>
    %14 = vector.broadcast %12 : vector<1x128xf32> to vector<2x128xf32>
    %15 = vector.broadcast %13 : vector<2x1xf32> to vector<2x128xf32>
    %16 = arith.cmpf olt, %14, %15 : vector<2x128xf32>
    %17 = arith.andi %11, %16 : vector<2x128xi1>
    %18 = vector.extract_strided_slice %6 {offsets = [2, 0], sizes = [1, 128], strides = [1, 1]} : vector<4x128xf32> to vector<1x128xf32>
    %19 = vector.extract_strided_slice %3 {offsets = [0, 2], sizes = [2, 1], strides = [1, 1]} : vector<2x4xf32> to vector<2x1xf32>
    %20 = vector.broadcast %18 : vector<1x128xf32> to vector<2x128xf32>
    %21 = vector.broadcast %19 : vector<2x1xf32> to vector<2x128xf32>
    %22 = arith.cmpf olt, %20, %21 : vector<2x128xf32>
    %23 = arith.andi %17, %22 : vector<2x128xi1>
    %24 = vector.extract_strided_slice %6 {offsets = [3, 0], sizes = [1, 128], strides = [1, 1]} : vector<4x128xf32> to vector<1x128xf32>
    %25 = vector.extract_strided_slice %3 {offsets = [0, 3], sizes = [2, 1], strides = [1, 1]} : vector<2x4xf32> to vector<2x1xf32>
    %26 = vector.broadcast %24 : vector<1x128xf32> to vector<2x128xf32>
    %27 = vector.broadcast %25 : vector<2x1xf32> to vector<2x128xf32>
    %28 = arith.cmpf olt, %26, %27 : vector<2x128xf32>
    %29 = arith.andi %23, %28 : vector<2x128xi1>
    %30 = arith.extui %29 : vector<2x128xi1> to vector<2x128xi32>
    %31 = arith.sitofp %30 : vector<2x128xi32> to vector<2x128xf32>
    %c0_5 = arith.constant 0 : index
    %c0_6 = arith.constant 0 : index
    %32 = vector.load %arg6[%c0_5, %c0_6] : memref<2x128xf32, #tpu.memory_space<vmem>>, vector<2x128xf32>
    %33 = arith.addf %32, %31 : vector<2x128xf32>
    %c0_7 = arith.constant 0 : index
    %c0_8 = arith.constant 0 : index
    %34 = vector.load %arg6[%c0_7, %c0_8] : memref<2x128xf32, #tpu.memory_space<vmem>>, vector<2x128xf32>
    tpu.vector_store %arg6[%c0_7, %c0_8], %33 {strides = array<i32>} : memref<2x128xf32, #tpu.memory_space<vmem>>, vector<2x128xf32>,
    %c1_i32 = arith.constant 1 : i32
    %c0_i32_9 = arith.constant 0 : i32
    %35 = arith.cmpi eq, %arg2, %c0_i32_9 : i32
    %36 = arith.extui %35 : i1 to i32
    %c0_i32_10 = arith.constant 0 : i32
    %37 = arith.cmpi ne, %36, %c0_i32_10 : i32
    scf.if %37 {
      %c0_11 = arith.constant 0 : index
      %c0_12 = arith.constant 0 : index
      %38 = vector.load %arg6[%c0_11, %c0_12] : memref<2x128xf32, #tpu.memory_space<vmem>>, vector<2x128xf32>
      %cst = arith.constant dense<0.000000e+00> : vector<2xf32>
      %39 = vector.multi_reduction <add>, %38, %cst [1] : vector<2x128xf32> to vector<2xf32>
      %40 = vector.shape_cast %39 : vector<2xf32> to vector<2x1xf32>
      %c0_13 = arith.constant 0 : index
      %c0_14 = arith.constant 0 : index
      %c0_15 = arith.constant 0 : index
      %41 = vector.load %arg5[%c0_13, %c0_14, %c0_15] : memref<1x2x1xf32, #tpu.memory_space<vmem>>, vector<1x2x1xf32>
      %42 = vector.shape_cast %41 : vector<1x2x1xf32> to vector<2x1xf32>
      %43 = vector.shape_cast %40 : vector<2x1xf32> to vector<1x2x1xf32>
      tpu.vector_store %arg5[%c0_13, %c0_14, %c0_15], %43 {strides = array<i32>} : memref<1x2x1xf32, #tpu.memory_space<vmem>>, vector<1x2x1xf32>,
    } else {
    }
    return
  }
  func.func @transform_0(%arg0: i32, %arg1: i32, %arg2: i32) -> (i32, i32) {
    %c0_i32 = arith.constant 0 : i32
    %c0_i32_0 = arith.constant 0 : i32
    return %arg1, %c0_i32 : i32, i32
  }
  func.func @transform_1(%arg0: i32, %arg1: i32, %arg2: i32) -> (i32, i32, i32) {
    %c1_i32 = arith.constant 1 : i32
    %0 = arith.muli %arg0, %c1_i32 : i32
    %1 = arith.addi %0, %arg2 : i32
    %c0_i32 = arith.constant 0 : i32
    %c0_i32_0 = arith.constant 0 : i32
    %c0_i32_1 = arith.constant 0 : i32
    return %1, %c0_i32, %c0_i32_0 : i32, i32, i32
  }
  func.func @transform_2(%arg0: i32, %arg1: i32, %arg2: i32) -> (i32, i32, i32) {
    %c0_i32 = arith.constant 0 : i32
    %c0_i32_0 = arith.constant 0 : i32
    return %arg0, %arg1, %c0_i32 : i32, i32, i32
  }
}

</mosaic_0001>

<llo_original>
// kernel: tpu_custom_call.1
$region0: #{tpu_custom_call.1}
  #allocation0 [shape = 'u32[]', space=smem, size = 0x4, offset = 0x4, fixed_abs, tag = 'smem constant byte address 0x4 - core index']
  #allocation1 [shape = 'u32[144,128]{1,0:T(1,128)}', space=vmem, size = 0x12000, scoped, tag = 'internal scratch']
  #allocation2 [shape = 'f32[2,128]{1,0:T(2,128)}', space=vmem, size = 0x400, scoped, tag = 'scratch operand']
  %s0 = inlined_call_operand.hbm [shape: f32[2,4], index: 0, kind: input, shape index: {}]
  %s1 = inlined_call_operand.hbm [shape: f32[1,4,128], index: 1, kind: input, shape index: {}]
  %s2 = inlined_call_operand.vmem [shape: f32[1,2,1], index: 2, kind: output, shape index: {}]
  %s3 = sld [smem:[#allocation0]]
  $region34: #{tpu_custom_call.1} parent=0
    _
  %s5 = ssub.s32 1, %s3
  %s6 = scalar_select 0, %s5, %s3
  $region1: #{tpu_custom_call.1} parent=0
    #allocation3 [shape = 'u8[1024]{0}', space=vmem, size = 0x400, scoped, tag = 'input window, operand 0, single buffered']
    #allocation4 [shape = 's32[1]{0}', space=sflag, size = 0x4, scoped, tag = 'scoped memory for tpu_custom_call.1']
    #allocation5 [shape = 'u8[2048]{0}', space=vmem, size = 0x800, scoped, tag = 'input window, operand 1, single buffered']
    #allocation6 [shape = 's32[1]{0}', space=sflag, size = 0x4, scoped, tag = 'scoped memory for tpu_custom_call.1']
    %7 = vsyncpa [#allocation4], 0
    %8 = vsyncpa [#allocation6], 0
    // Predicated region
    $region2: #{tpu_custom_call.1} parent=1 // pred_check
      _
    $region3: #{tpu_custom_call.1} parent=1 // pred_check_branch
      %10 = sbr.rel (0) target = $region5
    $region4: #{tpu_custom_call.1} parent=1 // pred_region
      %s12 = ssub.s32 32, 32
      %13 = vsyncadd [#allocation4], %s12
      %s15 = sshll.u32 [#allocation3], 4
      %s16 = int_to_ptr.vmem [resolvable:$true] %s15
      %18 = dma.hbm_to_vmem [thread:$0]  %s0, 32, %s16, [#allocation4]
    $region5: #{tpu_custom_call.1} parent=1 // pred_fallthru
      _
    // Predicated region
    $region6: #{tpu_custom_call.1} parent=1 // pred_check
      _
    $region7: #{tpu_custom_call.1} parent=1 // pred_check_branch
      %20 = sbr.rel (0) target = $region9
    $region8: #{tpu_custom_call.1} parent=1 // pred_region
      %s21 = sadd.s32 0, 0
      %s23 = ssub.s32 64, 64
      %24 = vsyncadd [#allocation6], %s23
      %s25 = smul.addr %s21, 64
      %s26 = scalar_lea.hbm %s1, %s25
      %s28 = sshll.u32 [#allocation5], 4
      %s29 = int_to_ptr.vmem [resolvable:$true] %s28
      %31 = dma.hbm_to_vmem [thread:$0]  %s26, 64, %s29, [#allocation6]
    $region9: #{tpu_custom_call.1} parent=1 // pred_fallthru
      _
    // Predicated region
    $region10: #{tpu_custom_call.1} parent=1 // pred_check
      _
    $region11: #{tpu_custom_call.1} parent=1 // pred_check_branch
      %33 = sbr.rel (0) target = $region13
    $region12: #{tpu_custom_call.1} parent=1 // pred_region
      %34 = dma.done [#allocation4], 32
    $region13: #{tpu_custom_call.1} parent=1 // pred_fallthru
      _
    // Predicated region
    $region14: #{tpu_custom_call.1} parent=1 // pred_check
      _
    $region15: #{tpu_custom_call.1} parent=1 // pred_check_branch
      %36 = sbr.rel (0) target = $region17
    $region16: #{tpu_custom_call.1} parent=1 // pred_region
      %37 = dma.done [#allocation6], 64
    $region17: #{tpu_custom_call.1} parent=1 // pred_fallthru
      _
    %s38 = sadd.s32 0, 0
    %p39 = scmp.eq.s32.totalorder 0, 0
    // Predicated region
    $region18: #{tpu_custom_call.1} parent=1 // pred_check
      %p40 = pneg %p39
    $region19: #{tpu_custom_call.1} parent=1 // pred_check_branch
      %42 = sbr.rel (%p40) target = $region21
    $region20: #{tpu_custom_call.1} parent=1 // pred_region
      %43 = vst [vmem:[#allocation2] sm:$0x3] 0.0
    $region21: #{tpu_custom_call.1} parent=1 // pred_fallthru
      _
    %v44 = vld [vmem:[#allocation3] sm:$0x3]
    %v45 = vld [vmem:[#allocation5] sm:$0xf]
    %v46 = vlaneseq
    %v47 = vshrl.u32 %v46, 7
    %v48 = vsub.s32 0, %v47
    %v49 = vrot.slane %v45, %v48
    %51 = vset.pattern.permute.xlu0 0
    %52 = vperm.xlu0 %51, %v44
    %v53 = vpop.permute.xlu0 %52
    %vm55 = vcmp.lt.f32.partialorder %v49, %v53
    %v56 = vlaneseq
    %v57 = vshrl.u32 %v56, 7
    %v58 = vsub.s32 1, %v57
    %v59 = vrot.slane %v45, %v58
    %60 = vset.pattern.permute.xlu0 1
    %61 = vperm.xlu0 %60, %v44
    %v62 = vpop.permute.xlu0 %61
    %vm64 = vcmp.lt.f32.partialorder %v59, %v62
    %vm65 = vmand %vm55, %vm64
    %v66 = vlaneseq
    %v67 = vshrl.u32 %v66, 7
    %v68 = vsub.s32 2, %v67
    %v69 = vrot.slane %v45, %v68
    %70 = vset.pattern.permute.xlu0 2
    %71 = vperm.xlu0 %70, %v44
    %v72 = vpop.permute.xlu0 %71
    %vm74 = vcmp.lt.f32.partialorder %v69, %v72
    %vm75 = vmand %vm65, %vm74
    %v76 = vlaneseq
    %v77 = vshrl.u32 %v76, 7
    %v78 = vsub.s32 3, %v77
    %v79 = vrot.slane %v45, %v78
    %80 = vset.pattern.permute.xlu0 3
    %81 = vperm.xlu0 %80, %v44
    %v82 = vpop.permute.xlu0 %81
    %vm84 = vcmp.lt.f32.partialorder %v79, %v82
    %vm85 = vmand %vm75, %vm84
    %v86 = vsel %vm85, 1, 0
    %v87 = vcvt.s32.f32 %v86
    %v88 = vld [vmem:[#allocation2] sm:$0x3]
    %v89 = vadd.f32 %v88, %v87
    %90 = vst [vmem:[#allocation2] sm:$0x3] %v89
    // Predicated region
    $region22: #{tpu_custom_call.1} parent=1 // pred_check
      %p91 = pneg %p39
    $region23: #{tpu_custom_call.1} parent=1 // pred_check_branch
      %93 = sbr.rel (%p91) target = $region25
    $region24: #{tpu_custom_call.1} parent=1 // pred_region
      %v94 = vld [vmem:[#allocation2] sm:$0x3]
      %vm95 = vcmask 1041408
      %v96 = vsel %vm95, %v94, 0.0
      %97 = vadd.xlane.f32.xlu0 %v96
      %v98 = vpop.xlane.xlu0 %97
      %vm99 = vcmask 1024
      %100 = vst.msk [vmem:[%s2] sm:$0x3] %vm99, %v98
    $region25: #{tpu_custom_call.1} parent=1 // pred_fallthru
      _
    // Predicated region
    $region26: #{tpu_custom_call.1} parent=1 // pred_check
      _
    $region27: #{tpu_custom_call.1} parent=1 // pred_check_branch
      %102 = sbr.rel (0) target = $region29
    $region28: #{tpu_custom_call.1} parent=1 // pred_region
      _
    $region29: #{tpu_custom_call.1} parent=1 // pred_fallthru
      _
    // Predicated region
    $region30: #{tpu_custom_call.1} parent=1 // pred_check
      _
    $region31: #{tpu_custom_call.1} parent=1 // pred_check_branch
      %104 = sbr.rel (0) target = $region33
    $region32: #{tpu_custom_call.1} parent=1 // pred_region
      _
    $region33: #{tpu_custom_call.1} parent=1 // pred_fallthru
      _
    %105 = vsyncpa [#allocation4], 1
    %106 = vsyncpa [#allocation6], 1

</llo_original>
